<compile_context>
chip_gen: v7x
topology: tpu7x:2x2x1
jax: 0.10.0
libtpu: 0.0.40
codegen_flags: <defaults>
</compile_context>

<pallas_src>
import numpy as np
import jax
import jax.numpy as jnp
from jax.experimental import pallas as pl
from jax.experimental.pallas import tpu as pltpu

NUM_CLASS = 2

# Per-step double-buffered VMEM budgets (conservative for v5e/v6e/v7x).
_BUDGET_A = 16 << 20
_BUDGET_B = 16 << 20


def _sigmoid(x):
    # exp overflows to +inf for very negative x -> 1/inf = 0, still correct.
    return 1.0 / (1.0 + jnp.exp(-x))


# ---------------------------------------------------------------------------
# Kernel A: fused 1x1 convolutions (channel matmuls), lane = flattened spatial.
# ---------------------------------------------------------------------------
def _conv_kernel(x1_ref, x2_ref, x3_ref, w1_ref, w2_ref, w3_ref,
                 l1_ref, c2_ref, c3_ref):
    # x*_ref blocks: (1, C, T) ; w*_ref: (2, C) ; outputs: (1, 2, T)
    c1 = jnp.dot(w1_ref[...], x1_ref[0], preferred_element_type=jnp.float32)
    l1_ref[0] = _sigmoid(c1).astype(l1_ref.dtype)          # x_layer1 tile (f32)
    c2_ref[0] = jnp.dot(w2_ref[...], x2_ref[0],
                        preferred_element_type=jnp.float32).astype(c2_ref.dtype)
    c3_ref[0] = jnp.dot(w3_ref[...], x3_ref[0],
                        preferred_element_type=jnp.float32).astype(c3_ref.dtype)


# ---------------------------------------------------------------------------
# Kernel B: separable bilinear resize + sigmoid + average (row & col tiled).
# ---------------------------------------------------------------------------
def _resize_kernel(l1_ref, c2_ref, c3_ref,
                   rh2_ref, rw2t_ref, rh3_ref, rw3t_ref,
                   o2_ref, o3_ref, oavg_ref):
    one_third = jnp.float32(1.0 / 3.0)
    for k in range(NUM_CLASS):        # static unroll over the 2 output channels
        c2k = c2_ref[0, k].astype(jnp.float32)
        c3k = c3_ref[0, k].astype(jnp.float32)
        # map 2: (th,h2)@(h2,w2) -> (th,w2) ; (th,w2)@(w2,tw) -> (th,tw)
        t2 = jnp.dot(rh2_ref[...], c2k, preferred_element_type=jnp.float32)
        l2 = _sigmoid(jnp.dot(t2, rw2t_ref[...], preferred_element_type=jnp.float32))
        # map 3
        t3 = jnp.dot(rh3_ref[...], c3k, preferred_element_type=jnp.float32)
        l3 = _sigmoid(jnp.dot(t3, rw3t_ref[...], preferred_element_type=jnp.float32))

        o2_ref[0, k] = l2
        o3_ref[0, k] = l3
        oavg_ref[0, k] = (l1_ref[0, k] + l2 + l3) * one_third


# ---------------------------------------------------------------------------
# Host-side helpers.
# ---------------------------------------------------------------------------
def _bilinear_resize_matrix(n_out: int, n_in: int) -> np.ndarray:
    """1-D bilinear interpolation matrix, PyTorch align_corners=False convention."""
    scale = n_in / n_out
    i = np.arange(n_out, dtype=np.float64)
    src = (i + 0.5) * scale - 0.5
    src = np.clip(src, 0.0, None)
    i0 = np.floor(src).astype(np.int64)
    i0 = np.clip(i0, 0, n_in - 1)
    i1 = np.minimum(i0 + 1, n_in - 1)
    lam = src - i0
    r = np.zeros((n_out, n_in), dtype=np.float32)
    r[np.arange(n_out), i0] += (1.0 - lam).astype(np.float32)
    r[np.arange(n_out), i1] += lam.astype(np.float32)
    return r


def _divisors(n):
    return [d for d in range(1, n + 1) if n % d == 0]


def _conv_step_bytes(t1, t2, t3, c1, c2c, c3c, in_b, inter_b):
    """Double-buffered per-step VMEM bytes for Kernel A blocks."""
    ins = (c1 * t1 + c2c * t2 + c3c * t3) * in_b
    outs = NUM_CLASS * t1 * 4 + NUM_CLASS * (t2 + t3) * inter_b
    return 2 * (ins + outs)


def _resize_step_bytes(th, tw, h2, w2s, h3, w3s, inter_b, r_b):
    """Double-buffered per-step VMEM bytes for Kernel B blocks."""
    io = (1 + 3) * th * tw * 4                       # l1 block + 3 f32 outputs
    rh = th * (h2 + h3) * r_b
    rw = (w2s + w3s) * tw * r_b
    cc = NUM_CLASS * (h2 * w2s + h3 * w3s) * inter_b
    return 2 * (io + rh + rw + cc)


def _pick_spatial_tiles(hw_h, hw_2, hw_3, c1, c2c, c3c, in_b, inter_b,
                        budget_bytes, min_tiles=1):
    """Smallest tile count (largest aligned tiles) fitting the byte budget."""
    def blk_ok(t, full):
        return (t == full) or (t % 128 == 0)

    best = None
    for nt in range(1, hw_3 + 1):
        if hw_h % nt or hw_2 % nt or hw_3 % nt:
            continue
        t1, t2, t3 = hw_h // nt, hw_2 // nt, hw_3 // nt
        if not (blk_ok(t1, hw_h) and blk_ok(t2, hw_2) and blk_ok(t3, hw_3)):
            continue
        if _conv_step_bytes(t1, t2, t3, c1, c2c, c3c, in_b, inter_b) > budget_bytes:
            continue
        if best is None:
            best = nt
        if nt >= min_tiles:
            return nt
    return best if best is not None else 1


def _pick_out_tiles(h_h, w_h, h2, w2s, h3, w3s, inter_b, r_b,
                    budget_bytes, min_points=1):
    """(n_row_tiles, n_col_tiles) for Kernel B: largest aligned tiles in budget."""
    def ok_rows(th):
        return th == h_h or th % 8 == 0

    def ok_cols(tw):
        return tw == w_h or tw % 128 == 0

    candidates = []
    for n_ht in _divisors(h_h):
        th = h_h // n_ht
        if not ok_rows(th):
            continue
        for n_wt in _divisors(w_h):
            tw = w_h // n_wt
            if not ok_cols(tw):
                continue
            if _resize_step_bytes(th, tw, h2, w2s, h3, w3s, inter_b, r_b) > budget_bytes:
                continue
            # Prefer fewest total tiles; tie-break toward wider (lane-dense) tiles.
            candidates.append((n_ht * n_wt, n_wt, n_ht))
    if not candidates:
        return 1, 1
    candidates.sort()
    for npts, n_wt, n_ht in candidates:
        if npts >= min_points:
            return n_ht, n_wt
    _, n_wt, n_ht = candidates[0]
    return n_ht, n_wt


def _vmem_limit_bytes(step_bytes):
    # step_bytes already accounts for double-buffering; add headroom for
    # compiler scratch, cap below v7x's 64 MiB physical VMEM.
    return int(min(max(step_bytes + (16 << 20), 24 << 20), 56 << 20))


# ---------------------------------------------------------------------------
# Forward pass.
# ---------------------------------------------------------------------------
def post_processing_standard(x_m3, x_m2, x_m1, w1, w2, w3):
    """x_m3/x_m2/x_m1 are x_out[-3], x_out[-2], x_out[-1] in NCHW.

    w1: (2, 64, 1, 1), w2: (2, 128, 1, 1), w3: (2, 256, 1, 1) (Conv2d, no bias).
    Returns (x_layer1, x_layer2, x_layer3, out), each NCHW (N, 2, h_h, w_h), f32.
    """
    N, c1, h_h, w_h = x_m3.shape
    _, c2c, h2, w2s = x_m2.shape
    _, c3c, h3, w3s = x_m1.shape
    hw_h, hw_2, hw_3 = h_h * w_h, h2 * w2s, h3 * w3s

    in_dt = x_m3.dtype
    inter_dt = jnp.bfloat16                 # HBM intermediates for maps 2/3
    in_b = jnp.dtype(in_dt).itemsize
    inter_b = jnp.dtype(inter_dt).itemsize
    r_b = 4                                 # resize matrices kept f32

    # NCHW -> (N, C, H*W): pure metadata reshape, no transpose, no copy.
    x1f = x_m3.reshape(N, c1, hw_h)
    x2f = x_m2.reshape(N, c2c, hw_2)
    x3f = x_m1.reshape(N, c3c, hw_3)

    # Conv2d 1x1 weights (out, in, 1, 1) -> (out, in), matching input dtype.
    w1m = jnp.asarray(w1).reshape(NUM_CLASS, c1).astype(in_dt)
    w2m = jnp.asarray(w2).reshape(NUM_CLASS, c2c).astype(in_dt)
    w3m = jnp.asarray(w3).reshape(NUM_CLASS, c3c).astype(in_dt)

    min_tiles = 2 if N == 1 else 1          # keep both v7x TCs busy at N == 1

    # ---------------- Kernel A: fused 1x1 convs ----------------
    nt = _pick_spatial_tiles(hw_h, hw_2, hw_3, c1, c2c, c3c, in_b, inter_b,
                             _BUDGET_A, min_tiles=min_tiles)
    t1, t2s, t3s = hw_h // nt, hw_2 // nt, hw_3 // nt
    vmem_a = _vmem_limit_bytes(
        _conv_step_bytes(t1, t2s, t3s, c1, c2c, c3c, in_b, inter_b))

    l1, c2, c3 = pl.pallas_call(
        _conv_kernel,
        out_shape=(jax.ShapeDtypeStruct((N, NUM_CLASS, hw_h), jnp.float32),
                   jax.ShapeDtypeStruct((N, NUM_CLASS, hw_2), inter_dt),
                   jax.ShapeDtypeStruct((N, NUM_CLASS, hw_3), inter_dt)),
        grid_spec=pltpu.PrefetchScalarGridSpec(
            num_scalar_prefetch=0,
            grid=(N, nt),
            in_specs=[
                pl.BlockSpec((1, c1, t1), lambda n, s: (n, 0, s)),
                pl.BlockSpec((1, c2c, t2s), lambda n, s: (n, 0, s)),
                pl.BlockSpec((1, c3c, t3s), lambda n, s: (n, 0, s)),
                pl.BlockSpec((NUM_CLASS, c1), lambda n, s: (0, 0)),
                pl.BlockSpec((NUM_CLASS, c2c), lambda n, s: (0, 0)),
                pl.BlockSpec((NUM_CLASS, c3c), lambda n, s: (0, 0)),
            ],
            out_specs=[
                pl.BlockSpec((1, NUM_CLASS, t1), lambda n, s: (n, 0, s)),
                pl.BlockSpec((1, NUM_CLASS, t2s), lambda n, s: (n, 0, s)),
                pl.BlockSpec((1, NUM_CLASS, t3s), lambda n, s: (n, 0, s)),
            ]),
        compiler_params=pltpu.CompilerParams(
            dimension_semantics=("parallel", "parallel"),
            vmem_limit_bytes=vmem_a),
    )(x1f, x2f, x3f, w1m, w2m, w3m)

    # Free metadata reshapes between the two kernels.
    x_layer1 = l1.reshape(N, NUM_CLASS, h_h, w_h)          # final output #1
    c2r = c2.reshape(N, NUM_CLASS, h2, w2s)
    c3r = c3.reshape(N, NUM_CLASS, h3, w3s)

    # 1-D bilinear interpolation matrices (separable resize), f32.
    rh2 = jnp.asarray(_bilinear_resize_matrix(h_h, h2))       # (h_h, h2)
    rw2t = jnp.asarray(_bilinear_resize_matrix(w_h, w2s).T)   # (w2, w_h)
    rh3 = jnp.asarray(_bilinear_resize_matrix(h_h, h3))       # (h_h, h3)
    rw3t = jnp.asarray(_bilinear_resize_matrix(w_h, w3s).T)   # (w3, w_h)

    # ---------------- Kernel B: resize + sigmoid + average ----------------
    n_ht, n_wt = _pick_out_tiles(h_h, w_h, h2, w2s, h3, w3s, inter_b, r_b,
                                 _BUDGET_B, min_points=min_tiles)
    th, tw = h_h // n_ht, w_h // n_wt
    vmem_b = _vmem_limit_bytes(
        _resize_step_bytes(th, tw, h2, w2s, h3, w3s, inter_b, r_b))

    out_sds = jax.ShapeDtypeStruct((N, NUM_CLASS, h_h, w_h), jnp.float32)

    x_layer2, x_layer3, out = pl.pallas_call(
        _resize_kernel,
        out_shape=(out_sds, out_sds, out_sds),
        grid_spec=pltpu.PrefetchScalarGridSpec(
            num_scalar_prefetch=0,
            grid=(N, n_ht, n_wt),
            in_specs=[
                pl.BlockSpec((1, NUM_CLASS, th, tw), lambda n, r, c: (n, 0, r, c)),
                pl.BlockSpec((1, NUM_CLASS, h2, w2s), lambda n, r, c: (n, 0, 0, 0)),
                pl.BlockSpec((1, NUM_CLASS, h3, w3s), lambda n, r, c: (n, 0, 0, 0)),
                pl.BlockSpec((th, h2), lambda n, r, c: (r, 0)),
                pl.BlockSpec((w2s, tw), lambda n, r, c: (0, c)),
                pl.BlockSpec((th, h3), lambda n, r, c: (r, 0)),
                pl.BlockSpec((w3s, tw), lambda n, r, c: (0, c)),
            ],
            out_specs=[pl.BlockSpec((1, NUM_CLASS, th, tw),
                                    lambda n, r, c: (n, 0, r, c))] * 3),
        compiler_params=pltpu.CompilerParams(
            dimension_semantics=("parallel", "parallel", "parallel"),
            vmem_limit_bytes=vmem_b),
    )(x_layer1, c2r, c3r, rh2, rw2t, rh3, rw3t)

    return x_layer1, x_layer2, x_layer3, out


# ---------------------------------------------------------------------------
# Pure-JAX f32 reference (same interpolation convention) for a sanity check.
# ---------------------------------------------------------------------------
def _reference(x_m3, x_m2, x_m1, w1, w2, w3):
    N, _, h_h, w_h = x_m3.shape

    def conv(x, w):
        wm = jnp.asarray(w).reshape(NUM_CLASS, -1).astype(jnp.float32)
        return jnp.einsum('oc,nchw->nohw', wm, x.astype(jnp.float32))

    def resize(t, h_in, w_in):
        rh = jnp.asarray(_bilinear_resize_matrix(h_h, h_in))
        rw = jnp.asarray(_bilinear_resize_matrix(w_h, w_in))
        return jnp.einsum('Hh,nchw,Ww->ncHW', rh, t, rw)

    sig = lambda v: 1.0 / (1.0 + jnp.exp(-v))
    l1 = sig(conv(x_m3, w1))
    l2 = sig(resize(conv(x_m2, w2), x_m2.shape[2], x_m2.shape[3]))
    l3 = sig(resize(conv(x_m1, w3), x_m1.shape[2], x_m1.shape[3]))
    return l1, l2, l3, (l1 + l2 + l3) / 3.0


if __name__ == "__main__":
    key = jax.random.PRNGKey(0)
    k1, k2, k3, kw1, kw2, kw3 = jax.random.split(key, 6)

    # Small GLAM-like pyramid: x_out[-3] high-res/64ch, [-2] mid/128ch, [-1] low/256ch.
    N, Hh, Wh = 2, 16, 16
    x_m3 = jax.random.normal(k1, (N, 64, Hh, Wh), dtype=jnp.float32)
    x_m2 = jax.random.normal(k2, (N, 128, Hh // 2, Wh // 2), dtype=jnp.float32)
    x_m1 = jax.random.normal(k3, (N, 256, Hh // 4, Wh // 4), dtype=jnp.float32)

    # Deterministic Conv2d weights (out=2, in=C, 1, 1), no bias.
    w1 = 0.05 * jax.random.normal(kw1, (NUM_CLASS, 64, 1, 1), dtype=jnp.float32)
    w2 = 0.05 * jax.random.normal(kw2, (NUM_CLASS, 128, 1, 1), dtype=jnp.float32)
    w3 = 0.05 * jax.random.normal(kw3, (NUM_CLASS, 256, 1, 1), dtype=jnp.float32)

    res = post_processing_standard(x_m3, x_m2, x_m1, w1, w2, w3)
    jax.block_until_ready(res)
    x_layer1, x_layer2, x_layer3, out = res

    assert x_layer1.shape == (N, NUM_CLASS, Hh, Wh)
    assert x_layer2.shape == (N, NUM_CLASS, Hh, Wh)
    assert x_layer3.shape == (N, NUM_CLASS, Hh, Wh)
    assert out.shape == (N, NUM_CLASS, Hh, Wh)

    # Numerical sanity check against a plain-JAX f32 reference.  Maps 2/3 pass
    # through bf16 HBM intermediates (pre-sigmoid logits), which bounds the
    # absolute error at ~2e-3 after the sigmoid; tolerance set accordingly.
    ref = _reference(x_m3, x_m2, x_m1, w1, w2, w3)
    tols = [dict(rtol=1e-3, atol=1e-3),   # x_layer1: pure f32 path
            dict(rtol=2e-3, atol=5e-3),   # x_layer2: bf16 intermediate
            dict(rtol=2e-3, atol=5e-3),   # x_layer3: bf16 intermediate
            dict(rtol=2e-3, atol=5e-3)]   # out: average of the above
    for got, want, tol in zip(res, ref, tols):
        np.testing.assert_allclose(np.asarray(got), np.asarray(want), **tol)

    print("KERNEL_OK")
</pallas_src>

<mosaic_0001>
module attributes {stable_mosaic.version = 11 : i64} {
  func.func @_conv_kernel(%arg0: i32, %arg1: i32, %arg2: memref<1x64x256xf32, #tpu.memory_space<vmem>>, %arg3: memref<1x128x64xf32, #tpu.memory_space<vmem>>, %arg4: memref<1x256x16xf32, #tpu.memory_space<vmem>>, %arg5: memref<2x64xf32, #tpu.memory_space<vmem>>, %arg6: memref<2x128xf32, #tpu.memory_space<vmem>>, %arg7: memref<2x256xf32, #tpu.memory_space<vmem>>, %arg8: memref<1x2x256xf32, #tpu.memory_space<vmem>>, %arg9: memref<1x2x64xbf16, #tpu.memory_space<vmem>>, %arg10: memref<1x2x16xbf16, #tpu.memory_space<vmem>>) attributes {dimension_semantics = [#tpu.dimension_semantics<parallel>, #tpu.dimension_semantics<parallel>], iteration_bounds = array<i64: 2, 1>, scalar_prefetch = 0 : i64, scratch_operands = 0 : i64, tpu.core_type = #tpu.core_type<tc>, window_params = [{transform_indices = @transform_0, window_bounds = array<i64: 1, 64, 256>}, {transform_indices = @transform_1, window_bounds = array<i64: 1, 128, 64>}, {transform_indices = @transform_2, window_bounds = array<i64: 1, 256, 16>}, {pipeline_mode = #tpu.pipeline_mode<synchronous>, transform_indices = @transform_3, window_bounds = array<i64: 2, 64>}, {pipeline_mode = #tpu.pipeline_mode<synchronous>, transform_indices = @transform_4, window_bounds = array<i64: 2, 128>}, {pipeline_mode = #tpu.pipeline_mode<synchronous>, transform_indices = @transform_5, window_bounds = array<i64: 2, 256>}, {transform_indices = @transform_6, window_bounds = array<i64: 1, 2, 256>}, {transform_indices = @transform_7, window_bounds = array<i64: 1, 2, 64>}, {transform_indices = @transform_8, window_bounds = array<i64: 1, 2, 16>}]} {
    %c0 = arith.constant 0 : index
    %c0_0 = arith.constant 0 : index
    %0 = vector.load %arg5[%c0, %c0_0] : memref<2x64xf32, #tpu.memory_space<vmem>>, vector<2x64xf32>
    %c0_1 = arith.constant 0 : index
    %c0_2 = arith.constant 0 : index
    %c0_3 = arith.constant 0 : index
    %1 = vector.load %arg2[%c0_1, %c0_2, %c0_3] : memref<1x64x256xf32, #tpu.memory_space<vmem>>, vector<1x64x256xf32>
    %2 = vector.shape_cast %1 : vector<1x64x256xf32> to vector<64x256xf32>
    %cst = arith.constant dense<0.000000e+00> : vector<2x256xf32>
    %3 = tpu.matmul %0, %2, %cst {dimension_numbers = #tpu.dot_dimension_numbers<[1], [0], [0], [1], [0, 0, 1, 1], [], []>} : vector<2x64xf32>, vector<64x256xf32>, vector<2x256xf32> -> vector<2x256xf32>
    %cst_4 = arith.constant 0.000000e+00 : f32
    %4 = vector.broadcast %cst_4 : f32 to vector<2x256xf32>
    %5 = arith.subf %4, %3 : vector<2x256xf32>
    %6 = math.exp %5 : vector<2x256xf32>
    %cst_5 = arith.constant 1.000000e+00 : f32
    %7 = vector.broadcast %cst_5 : f32 to vector<2x256xf32>
    %8 = arith.addf %7, %6 : vector<2x256xf32>
    %cst_6 = arith.constant 1.000000e+00 : f32
    %9 = vector.broadcast %cst_6 : f32 to vector<2x256xf32>
    %10 = arith.divf %9, %8 : vector<2x256xf32>
    %c0_7 = arith.constant 0 : index
    %c0_8 = arith.constant 0 : index
    %c0_9 = arith.constant 0 : index
    %11 = vector.load %arg8[%c0_7, %c0_8, %c0_9] : memref<1x2x256xf32, #tpu.memory_space<vmem>>, vector<1x2x256xf32>
    %12 = vector.shape_cast %11 : vector<1x2x256xf32> to vector<2x256xf32>
    %13 = vector.shape_cast %10 : vector<2x256xf32> to vector<1x2x256xf32>
    tpu.vector_store %arg8[%c0_7, %c0_8, %c0_9], %13 {strides = array<i32>} : memref<1x2x256xf32, #tpu.memory_space<vmem>>, vector<1x2x256xf32>,
    %c0_10 = arith.constant 0 : index
    %c0_11 = arith.constant 0 : index
    %14 = vector.load %arg6[%c0_10, %c0_11] : memref<2x128xf32, #tpu.memory_space<vmem>>, vector<2x128xf32>
    %c0_12 = arith.constant 0 : index
    %c0_13 = arith.constant 0 : index
    %c0_14 = arith.constant 0 : index
    %15 = vector.load %arg3[%c0_12, %c0_13, %c0_14] : memref<1x128x64xf32, #tpu.memory_space<vmem>>, vector<1x128x64xf32>
    %16 = vector.shape_cast %15 : vector<1x128x64xf32> to vector<128x64xf32>
    %cst_15 = arith.constant dense<0.000000e+00> : vector<2x64xf32>
    %17 = tpu.matmul %14, %16, %cst_15 {dimension_numbers = #tpu.dot_dimension_numbers<[1], [0], [0], [1], [0, 0, 1, 1], [], []>} : vector<2x128xf32>, vector<128x64xf32>, vector<2x64xf32> -> vector<2x64xf32>
    %18 = arith.truncf %17 : vector<2x64xf32> to vector<2x64xbf16>
    %c0_16 = arith.constant 0 : index
    %c0_17 = arith.constant 0 : index
    %c0_18 = arith.constant 0 : index
    %19 = vector.load %arg9[%c0_16, %c0_17, %c0_18] : memref<1x2x64xbf16, #tpu.memory_space<vmem>>, vector<1x2x64xbf16>
    %20 = vector.shape_cast %19 : vector<1x2x64xbf16> to vector<2x64xbf16>
    %21 = vector.shape_cast %18 : vector<2x64xbf16> to vector<1x2x64xbf16>
    tpu.vector_store %arg9[%c0_16, %c0_17, %c0_18], %21 {strides = array<i32>} : memref<1x2x64xbf16, #tpu.memory_space<vmem>>, vector<1x2x64xbf16>,
    %c0_19 = arith.constant 0 : index
    %c0_20 = arith.constant 0 : index
    %22 = vector.load %arg7[%c0_19, %c0_20] : memref<2x256xf32, #tpu.memory_space<vmem>>, vector<2x256xf32>
    %c0_21 = arith.constant 0 : index
    %c0_22 = arith.constant 0 : index
    %c0_23 = arith.constant 0 : index
    %23 = vector.load %arg4[%c0_21, %c0_22, %c0_23] : memref<1x256x16xf32, #tpu.memory_space<vmem>>, vector<1x256x16xf32>
    %24 = vector.shape_cast %23 : vector<1x256x16xf32> to vector<256x16xf32>
    %cst_24 = arith.constant dense<0.000000e+00> : vector<2x16xf32>
    %25 = tpu.matmul %22, %24, %cst_24 {dimension_numbers = #tpu.dot_dimension_numbers<[1], [0], [0], [1], [0, 0, 1, 1], [], []>} : vector<2x256xf32>, vector<256x16xf32>, vector<2x16xf32> -> vector<2x16xf32>
    %26 = arith.truncf %25 : vector<2x16xf32> to vector<2x16xbf16>
    %c0_25 = arith.constant 0 : index
    %c0_26 = arith.constant 0 : index
    %c0_27 = arith.constant 0 : index
    %27 = vector.load %arg10[%c0_25, %c0_26, %c0_27] : memref<1x2x16xbf16, #tpu.memory_space<vmem>>, vector<1x2x16xbf16>
    %28 = vector.shape_cast %27 : vector<1x2x16xbf16> to vector<2x16xbf16>
    %29 = vector.shape_cast %26 : vector<2x16xbf16> to vector<1x2x16xbf16>
    tpu.vector_store %arg10[%c0_25, %c0_26, %c0_27], %29 {strides = array<i32>} : memref<1x2x16xbf16, #tpu.memory_space<vmem>>, vector<1x2x16xbf16>,
    return
  }
  func.func @transform_0(%arg0: i32, %arg1: i32) -> (i32, i32, i32) {
    %c0_i32 = arith.constant 0 : i32
    %c0_i32_0 = arith.constant 0 : i32
    return %arg0, %c0_i32, %arg1 : i32, i32, i32
  }
  func.func @transform_1(%arg0: i32, %arg1: i32) -> (i32, i32, i32) {
    %c0_i32 = arith.constant 0 : i32
    %c0_i32_0 = arith.constant 0 : i32
    return %arg0, %c0_i32, %arg1 : i32, i32, i32
  }
  func.func @transform_2(%arg0: i32, %arg1: i32) -> (i32, i32, i32) {
    %c0_i32 = arith.constant 0 : i32
    %c0_i32_0 = arith.constant 0 : i32
    return %arg0, %c0_i32, %arg1 : i32, i32, i32
  }
  func.func @transform_3(%arg0: i32, %arg1: i32) -> (i32, i32) {
    %c0_i32 = arith.constant 0 : i32
    %c0_i32_0 = arith.constant 0 : i32
    %c0_i32_1 = arith.constant 0 : i32
    return %c0_i32, %c0_i32_0 : i32, i32
  }
  func.func @transform_4(%arg0: i32, %arg1: i32) -> (i32, i32) {
    %c0_i32 = arith.constant 0 : i32
    %c0_i32_0 = arith.constant 0 : i32
    %c0_i32_1 = arith.constant 0 : i32
    return %c0_i32, %c0_i32_0 : i32, i32
  }
  func.func @transform_5(%arg0: i32, %arg1: i32) -> (i32, i32) {
    %c0_i32 = arith.constant 0 : i32
    %c0_i32_0 = arith.constant 0 : i32
    %c0_i32_1 = arith.constant 0 : i32
    return %c0_i32, %c0_i32_0 : i32, i32
  }
  func.func @transform_6(%arg0: i32, %arg1: i32) -> (i32, i32, i32) {
    %c0_i32 = arith.constant 0 : i32
    %c0_i32_0 = arith.constant 0 : i32
    return %arg0, %c0_i32, %arg1 : i32, i32, i32
  }
  func.func @transform_7(%arg0: i32, %arg1: i32) -> (i32, i32, i32) {
    %c0_i32 = arith.constant 0 : i32
    %c0_i32_0 = arith.constant 0 : i32
    return %arg0, %c0_i32, %arg1 : i32, i32, i32
  }
  func.func @transform_8(%arg0: i32, %arg1: i32) -> (i32, i32, i32) {
    %c0_i32 = arith.constant 0 : i32
    %c0_i32_0 = arith.constant 0 : i32
    return %arg0, %c0_i32, %arg1 : i32, i32, i32
  }
}

</mosaic_0001>

<llo_original>
// kernel: tpu_custom_call.1
$region0: #{tpu_custom_call.1}
  #allocation0 [shape = 'u32[]', space=smem, size = 0x4, offset = 0x4, fixed_abs, tag = 'smem constant byte address 0x4 - core index']
  #allocation1 [shape = 'u32[144,128]{1,0:T(1,128)}', space=vmem, size = 0x12000, scoped, tag = 'internal scratch']
  %s0 = inlined_call_operand.vmem [shape: f32[2,64,256], index: 0, kind: input, shape index: {}]
  %s1 = inlined_call_operand.vmem [shape: f32[2,128,64], index: 1, kind: input, shape index: {}]
  %s2 = inlined_call_operand.vmem [shape: f32[2,256,16], index: 2, kind: input, shape index: {}]
  %s3 = inlined_call_operand.vmem [shape: f32[2,64], index: 3, kind: input, shape index: {}]
  %s4 = inlined_call_operand.vmem [shape: f32[2,128], index: 4, kind: input, shape index: {}]
  %s5 = inlined_call_operand.vmem [shape: f32[2,256], index: 5, kind: input, shape index: {}]
  %s6 = inlined_call_operand.hbm [shape: f32[2,2,256], index: 6, kind: output, shape index: {0}]
  %s7 = inlined_call_operand.hbm [shape: bf16[2,2,64], index: 7, kind: output, shape index: {1}]
  %s8 = inlined_call_operand.hbm [shape: bf16[2,2,16], index: 8, kind: output, shape index: {2}]
  %9 = xla_tuple %s6, %s7, %s8
  %s10 = sld [smem:[#allocation0]]
  $region73: #{tpu_custom_call.1} parent=0
    _
  %s12 = ssub.s32 1, %s10
  %s13 = scalar_select 0, %s12, %s10
  $region1: #{tpu_custom_call.1} parent=0
    #allocation2 [shape = 'u8[4096]{0}', space=vmem, size = 0x1000, scoped, tag = 'output window, operand 0']
    #allocation3 [shape = 's32[2]{0}', space=sflag, size = 0x8, scoped, tag = 'scoped memory for tpu_custom_call.1']
    #allocation4 [shape = 'u8[1024]{0}', space=vmem, size = 0x400, scoped, tag = 'output window, operand 1']
    #allocation5 [shape = 's32[2]{0}', space=sflag, size = 0x8, scoped, tag = 'scoped memory for tpu_custom_call.1']
    #allocation6 [shape = 'u8[1024]{0}', space=vmem, size = 0x400, scoped, tag = 'output window, operand 2']
    %14 = vsyncpa [#allocation3], 0
    %s15 = scalar_lea.sflag [#allocation3], 1
    %16 = vsyncpa %s15, 0
    %17 = vsyncpa [#allocation5], 0
    %s18 = scalar_lea.sflag [#allocation5], 1
    %19 = vsyncpa %s18, 0
    loop: start=0, step=1, limit=4
    $region2: #{tpu_custom_call.1} parent=1 // loop_pre_header
      _
    $region3: #{tpu_custom_call.1} parent=1 // loop_header
      %s21 = sphi 0, %s25
      %p22 = scmp.ge.s32.totalorder %s21, 4
      %s28 = sphi 0, %s40
      %s29 = sphi 0, %s36
      %s30 = sphi 0, %s28
      %s31 = sphi 0, %s29
      %s32 = sphi 0, %s30
      %s33 = sphi 0, %s31
      %s45 = sphi 0, %s47
      %s48 = sphi 0, %s45
      %s49 = sphi 0, %s48
      %s65 = sphi 0, %s49
      %s73 = sphi 0, %s75
      %s76 = sphi 0, %s73
      %s77 = sphi 0, %s76
      %s93 = sphi 0, %s77
      %s101 = sphi 0, %s103
      %s104 = sphi 0, %s101
      %s105 = sphi 0, %s104
      %s121 = sphi 0, %s105
      %s125 = sphi 0, %s125
      %s127 = sphi 0, %s125
      %s128 = sphi 0, %s127
      %s142 = sphi 0, %s128
      %s146 = sphi 0, %s146
      %s148 = sphi 0, %s146
      %s149 = sphi 0, %s148
      %s163 = sphi 0, %s149
      %s167 = sphi 0, %s167
      %s169 = sphi 0, %s167
      %s170 = sphi 0, %s169
      %s184 = sphi 0, %s170
      %s192 = sphi 0, %s194
      %s195 = sphi 0, %s192
      %s196 = sphi 0, %s195
      %s212 = sphi 0, %s196
      %s220 = sphi 0, %s222
      %s223 = sphi 0, %s220
      %s224 = sphi 0, %s223
      %s240 = sphi 0, %s224
      %s248 = sphi 0, %s250
      %s251 = sphi 0, %s248
      %s252 = sphi 0, %s251
      %s268 = sphi 0, %s252
    $region4: #{tpu_custom_call.1} parent=1 // loop_header_branch
      %24 = sbr.rel (%p22) target = $region8
    $region5: #{tpu_custom_call.1} parent=1 // loop_body
      %s26 = ssub.s32 %s21, 1
      %s27 = ssub.s32 %s21, 2
      %s34 = sadd.s32 1, %s29
      %p35 = scmp.ge.s32.totalorder %s34, 1
      %s36 = scalar_select %p35, 0, %s34
      %s37 = sadd.s32 1, %s28
      %s38 = scalar_select %p35, %s37, %s28
      %p39 = scmp.ge.s32.totalorder %s38, 2
      %s40 = scalar_select %p39, 0, %s38
      %s41 = ssub.s32 %s28, %s40
      %s42 = ssub.s32 %s29, %s36
      %s43 = sor.u32 %s41, %s42
      %p44 = scmp.eq.s32.totalorder %s43, 0
      %s46 = sadd.s32 %s45, 1
      %s47 = scalar_select %p44, %s45, %s46
      %p50 = pneg %p44
      %p51 = scmp.eq.s32.totalorder %s21, 1
      %p52 = por %p50, %p51
      %p53 = scmp.ne.s32.totalorder %s45, %s48
      %p54 = scmp.eq.s32.totalorder %s21, 0
      %p55 = por %p53, %p54
      %p56 = scmp.ne.s32.totalorder %s45, %s48
      %p57 = scmp.eq.s32.totalorder %s26, 1
      %p58 = por %p56, %p57
      %p59 = scmp.ne.s32.totalorder %s48, %s49
      %p60 = scmp.eq.s32.totalorder %s26, 0
      %p61 = por %p59, %p60
      %p62 = scmp.ne.s32.totalorder %s48, %s49
      %p63 = scmp.eq.s32.totalorder %s27, 1
      %p64 = por %p62, %p63
      %p66 = scmp.ne.s32.totalorder %s49, %s65
      %p67 = scmp.eq.s32.totalorder %s27, 0
      %p68 = por %p66, %p67
      %s69 = ssub.s32 %s28, %s40
      %s70 = ssub.s32 %s29, %s36
      %s71 = sor.u32 %s69, %s70
      %p72 = scmp.eq.s32.totalorder %s71, 0
      %s74 = sadd.s32 %s73, 1
      %s75 = scalar_select %p72, %s73, %s74
      %p78 = pneg %p72
      %p79 = scmp.eq.s32.totalorder %s21, 1
      %p80 = por %p78, %p79
      %p81 = scmp.ne.s32.totalorder %s73, %s76
      %p82 = scmp.eq.s32.totalorder %s21, 0
      %p83 = por %p81, %p82
      %p84 = scmp.ne.s32.totalorder %s73, %s76
      %p85 = scmp.eq.s32.totalorder %s26, 1
      %p86 = por %p84, %p85
      %p87 = scmp.ne.s32.totalorder %s76, %s77
      %p88 = scmp.eq.s32.totalorder %s26, 0
      %p89 = por %p87, %p88
      %p90 = scmp.ne.s32.totalorder %s76, %s77
      %p91 = scmp.eq.s32.totalorder %s27, 1
      %p92 = por %p90, %p91
      %p94 = scmp.ne.s32.totalorder %s77, %s93
      %p95 = scmp.eq.s32.totalorder %s27, 0
      %p96 = por %p94, %p95
      %s97 = ssub.s32 %s28, %s40
      %s98 = ssub.s32 %s29, %s36
      %s99 = sor.u32 %s97, %s98
      %p100 = scmp.eq.s32.totalorder %s99, 0
      %s102 = sadd.s32 %s101, 1
      %s103 = scalar_select %p100, %s101, %s102
      %p106 = pneg %p100
      %p107 = scmp.eq.s32.totalorder %s21, 1
      %p108 = por %p106, %p107
      %p109 = scmp.ne.s32.totalorder %s101, %s104
      %p110 = scmp.eq.s32.totalorder %s21, 0
      %p111 = por %p109, %p110
      %p112 = scmp.ne.s32.totalorder %s101, %s104
      %p113 = scmp.eq.s32.totalorder %s26, 1
      %p114 = por %p112, %p113
      %p115 = scmp.ne.s32.totalorder %s104, %s105
      %p116 = scmp.eq.s32.totalorder %s26, 0
      %p117 = por %p115, %p116
      %p118 = scmp.ne.s32.totalorder %s104, %s105
      %p119 = scmp.eq.s32.totalorder %s27, 1
      %p120 = por %p118, %p119
      %p122 = scmp.ne.s32.totalorder %s105, %s121
      %p123 = scmp.eq.s32.totalorder %s27, 0
      %p124 = por %p122, %p123
      %s126 = sadd.s32 %s125, 1
      %p129 = scmp.eq.s32.totalorder %s21, 1
      %p130 = scmp.ne.s32.totalorder %s125, %s127
      %p131 = scmp.eq.s32.totalorder %s21, 0
      %p132 = por %p130, %p131
      %p133 = scmp.ne.s32.totalorder %s125, %s127
      %p134 = scmp.eq.s32.totalorder %s26, 1
      %p135 = por %p133, %p134
      %p136 = scmp.ne.s32.totalorder %s127, %s128
      %p137 = scmp.eq.s32.totalorder %s26, 0
      %p138 = por %p136, %p137
      %p139 = scmp.ne.s32.totalorder %s127, %s128
      %p140 = scmp.eq.s32.totalorder %s27, 1
      %p141 = por %p139, %p140
      %p143 = scmp.ne.s32.totalorder %s128, %s142
      %p144 = scmp.eq.s32.totalorder %s27, 0
      %p145 = por %p143, %p144
      %s147 = sadd.s32 %s146, 1
      %p150 = scmp.eq.s32.totalorder %s21, 1
      %p151 = scmp.ne.s32.totalorder %s146, %s148
      %p152 = scmp.eq.s32.totalorder %s21, 0
      %p153 = por %p151, %p152
      %p154 = scmp.ne.s32.totalorder %s146, %s148
      %p155 = scmp.eq.s32.totalorder %s26, 1
      %p156 = por %p154, %p155
      %p157 = scmp.ne.s32.totalorder %s148, %s149
      %p158 = scmp.eq.s32.totalorder %s26, 0
      %p159 = por %p157, %p158
      %p160 = scmp.ne.s32.totalorder %s148, %s149
      %p161 = scmp.eq.s32.totalorder %s27, 1
      %p162 = por %p160, %p161
      %p164 = scmp.ne.s32.totalorder %s149, %s163
      %p165 = scmp.eq.s32.totalorder %s27, 0
      %p166 = por %p164, %p165
      %s168 = sadd.s32 %s167, 1
      %p171 = scmp.eq.s32.totalorder %s21, 1
      %p172 = scmp.ne.s32.totalorder %s167, %s169
      %p173 = scmp.eq.s32.totalorder %s21, 0
      %p174 = por %p172, %p173
      %p175 = scmp.ne.s32.totalorder %s167, %s169
      %p176 = scmp.eq.s32.totalorder %s26, 1
      %p177 = por %p175, %p176
      %p178 = scmp.ne.s32.totalorder %s169, %s170
      %p179 = scmp.eq.s32.totalorder %s26, 0
      %p180 = por %p178, %p179
      %p181 = scmp.ne.s32.totalorder %s169, %s170
      %p182 = scmp.eq.s32.totalorder %s27, 1
      %p183 = por %p181, %p182
      %p185 = scmp.ne.s32.totalorder %s170, %s184
      %p186 = scmp.eq.s32.totalorder %s27, 0
      %p187 = por %p185, %p186
      %s188 = ssub.s32 %s28, %s40
      %s189 = ssub.s32 %s29, %s36
      %s190 = sor.u32 %s188, %s189
      %p191 = scmp.eq.s32.totalorder %s190, 0
      %s193 = sadd.s32 %s192, 1
      %s194 = scalar_select %p191, %s192, %s193
      %p197 = pneg %p191
      %p198 = scmp.eq.s32.totalorder %s21, 1
      %p199 = por %p197, %p198
      %p200 = scmp.ne.s32.totalorder %s192, %s195
      %p201 = scmp.eq.s32.totalorder %s21, 0
      %p202 = por %p200, %p201
      %p203 = scmp.ne.s32.totalorder %s192, %s195
      %p204 = scmp.eq.s32.totalorder %s26, 1
      %p205 = por %p203, %p204
      %p206 = scmp.ne.s32.totalorder %s195, %s196
      %p207 = scmp.eq.s32.totalorder %s26, 0
      %p208 = por %p206, %p207
      %p209 = scmp.ne.s32.totalorder %s195, %s196
      %p210 = scmp.eq.s32.totalorder %s27, 1
      %p211 = por %p209, %p210
      %p213 = scmp.ne.s32.totalorder %s196, %s212
      %p214 = scmp.eq.s32.totalorder %s27, 0
      %p215 = por %p213, %p214
      %s216 = ssub.s32 %s28, %s40
      %s217 = ssub.s32 %s29, %s36
      %s218 = sor.u32 %s216, %s217
      %p219 = scmp.eq.s32.totalorder %s218, 0
      %s221 = sadd.s32 %s220, 1
      %s222 = scalar_select %p219, %s220, %s221
      %p225 = pneg %p219
      %p226 = scmp.eq.s32.totalorder %s21, 1
      %p227 = por %p225, %p226
      %p228 = scmp.ne.s32.totalorder %s220, %s223
      %p229 = scmp.eq.s32.totalorder %s21, 0
      %p230 = por %p228, %p229
      %p231 = scmp.ne.s32.totalorder %s220, %s223
      %p232 = scmp.eq.s32.totalorder %s26, 1
      %p233 = por %p231, %p232
      %p234 = scmp.ne.s32.totalorder %s223, %s224
      %p235 = scmp.eq.s32.totalorder %s26, 0
      %p236 = por %p234, %p235
      %p237 = scmp.ne.s32.totalorder %s223, %s224
      %p238 = scmp.eq.s32.totalorder %s27, 1
      %p239 = por %p237, %p238
      %p241 = scmp.ne.s32.totalorder %s224, %s240
      %p242 = scmp.eq.s32.totalorder %s27, 0
      %p243 = por %p241, %p242
      %s244 = ssub.s32 %s28, %s40
      %s245 = ssub.s32 %s29, %s36
      %s246 = sor.u32 %s244, %s245
      %p247 = scmp.eq.s32.totalorder %s246, 0
      %s249 = sadd.s32 %s248, 1
      %s250 = scalar_select %p247, %s248, %s249
      %p253 = pneg %p247
      %p254 = scmp.eq.s32.totalorder %s21, 1
      %p255 = por %p253, %p254
      %p256 = scmp.ne.s32.totalorder %s248, %s251
      %p257 = scmp.eq.s32.totalorder %s21, 0
      %p258 = por %p256, %p257
      %p259 = scmp.ne.s32.totalorder %s248, %s251
      %p260 = scmp.eq.s32.totalorder %s26, 1
      %p261 = por %p259, %p260
      %p262 = scmp.ne.s32.totalorder %s251, %s252
      %p263 = scmp.eq.s32.totalorder %s26, 0
      %p264 = por %p262, %p263
      %p265 = scmp.ne.s32.totalorder %s251, %s252
      %p266 = scmp.eq.s32.totalorder %s27, 1
      %p267 = por %p265, %p266
      %p269 = scmp.ne.s32.totalorder %s252, %s268
      %p270 = scmp.eq.s32.totalorder %s27, 0
      %p271 = por %p269, %p270
      %p272 = scmp.le.s32.totalorder 1, %s21
      %p273 = scmp.lt.s32.totalorder %s21, 3
      %p274 = pnand %p272, %p273
      %p275 = pneg %p274
      // Predicated region
      $region9: #{tpu_custom_call.1} parent=5 // pred_check
        _
      $region10: #{tpu_custom_call.1} parent=5 // pred_check_branch
        %277 = sbr.rel (%p274) target = $region12
      $region11: #{tpu_custom_call.1} parent=5 // pred_region
        %s278 = ssub.s32 %s21, 1
        // Predicated region
        $region13: #{tpu_custom_call.1} parent=11 // pred_check
          %p279 = pneg %p138
        $region14: #{tpu_custom_call.1} parent=11 // pred_check_branch
          %281 = sbr.rel (%p279) target = $region16
        $region15: #{tpu_custom_call.1} parent=11 // pred_region
          _
        $region16: #{tpu_custom_call.1} parent=11 // pred_fallthru
          _
        // Predicated region
        $region17: #{tpu_custom_call.1} parent=11 // pred_check
          %p282 = pneg %p159
        $region18: #{tpu_custom_call.1} parent=11 // pred_check_branch
          %284 = sbr.rel (%p282) target = $region20
        $region19: #{tpu_custom_call.1} parent=11 // pred_region
          _
        $region20: #{tpu_custom_call.1} parent=11 // pred_fallthru
          _
        // Predicated region
        $region21: #{tpu_custom_call.1} parent=11 // pred_check
          %p285 = pneg %p180
        $region22: #{tpu_custom_call.1} parent=11 // pred_check_branch
          %287 = sbr.rel (%p285) target = $region24
        $region23: #{tpu_custom_call.1} parent=11 // pred_region
          _
        $region24: #{tpu_custom_call.1} parent=11 // pred_fallthru
          _
      $region12: #{tpu_custom_call.1} parent=5 // pred_fallthru
        _
      %p288 = scmp.lt.s32.totalorder %s21, 2
      // Predicated region
      $region25: #{tpu_custom_call.1} parent=5 // pred_check
        %p289 = pneg %p288
      $region26: #{tpu_custom_call.1} parent=5 // pred_check_branch
        %291 = sbr.rel (%p289) target = $region28
      $region27: #{tpu_custom_call.1} parent=5 // pred_region
        // Predicated region
        $region29: #{tpu_custom_call.1} parent=27 // pred_check
          %p292 = pneg %p55
        $region30: #{tpu_custom_call.1} parent=27 // pred_check_branch
          %294 = sbr.rel (%p292) target = $region32
        $region31: #{tpu_custom_call.1} parent=27 // pred_region
          %s295 = smul.u32 2, %s29
          %p296 = scmp.lt.s32.totalorder %s28, 1
          %s297 = scalar_select %p296, %s28, 1
          %p298 = scmp.lt.s32.totalorder %s295, 1
          %s299 = scalar_select %p298, %s295, 1
          %s300 = smul.addr %s297, 16
          %s301 = sadd.s32 %s299, %s300
          %s302 = smul.addr %s301, 8
          %s303 = scalar_lea.vmem %s0, %s302
          %s304 = smul.u32 2, %s29
        $region32: #{tpu_custom_call.1} parent=27 // pred_fallthru
          _
        // Predicated region
        $region33: #{tpu_custom_call.1} parent=27 // pred_check
          %p305 = pneg %p83
        $region34: #{tpu_custom_call.1} parent=27 // pred_check_branch
          %307 = sbr.rel (%p305) target = $region36
        $region35: #{tpu_custom_call.1} parent=27 // pred_region
          %p308 = scmp.lt.s32.totalorder %s28, 1
          %s309 = scalar_select %p308, %s28, 1
          %p310 = scmp.lt.s32.totalorder %s29, 0
          %s311 = scalar_select %p310, %s29, 0
          %s312 = smul.addr %s309, 16
          %s313 = sadd.s32 %s311, %s312
          %s314 = smul.addr %s313, 8
          %s315 = scalar_lea.vmem %s1, %s314
        $region36: #{tpu_custom_call.1} parent=27 // pred_fallthru
          _
        // Predicated region
        $region37: #{tpu_custom_call.1} parent=27 // pred_check
          %p316 = pneg %p111
        $region38: #{tpu_custom_call.1} parent=27 // pred_check_branch
          %318 = sbr.rel (%p316) target = $region40
        $region39: #{tpu_custom_call.1} parent=27 // pred_region
          %p319 = scmp.lt.s32.totalorder %s28, 1
          %s320 = scalar_select %p319, %s28, 1
          %p321 = scmp.lt.s32.totalorder %s29, 0
          %s322 = scalar_select %p321, %s29, 0
          %s323 = smul.addr %s320, 32
          %s324 = sadd.s32 %s322, %s323
          %s325 = smul.addr %s324, 8
          %s326 = scalar_lea.vmem %s2, %s325
        $region40: #{tpu_custom_call.1} parent=27 // pred_fallthru
          _
      $region28: #{tpu_custom_call.1} parent=5 // pred_fallthru
        _
      %p327 = scmp.le.s32.totalorder 1, %s21
      %p328 = scmp.lt.s32.totalorder %s21, 3
      %p329 = pnand %p327, %p328
      %p330 = pneg %p329
      // Predicated region
      $region41: #{tpu_custom_call.1} parent=5 // pred_check
        _
      $region42: #{tpu_custom_call.1} parent=5 // pred_check_branch
        %332 = sbr.rel (%p329) target = $region44
      $region43: #{tpu_custom_call.1} parent=5 // pred_region
        %s333 = ssub.s32 %s21, 1
        %s334 = smul.u32 2, %s31
        %p335 = scmp.lt.s32.totalorder %s30, 1
        %s336 = scalar_select %p335, %s30, 1
        %p337 = scmp.lt.s32.totalorder %s334, 1
        %s338 = scalar_select %p337, %s334, 1
        %s339 = smul.addr %s336, 16
        %s340 = sadd.s32 %s338, %s339
        %s341 = smul.addr %s340, 8
        %s342 = scalar_lea.vmem %s0, %s341
        %p343 = pneg %p61
        %p344 = pneg %p58
        %p345 = scmp.lt.s32.totalorder %s30, 1
        %s346 = scalar_select %p345, %s30, 1
        %p347 = scmp.lt.s32.totalorder %s31, 0
        %s348 = scalar_select %p347, %s31, 0
        %s349 = smul.addr %s346, 16
        %s350 = sadd.s32 %s348, %s349
        %s351 = smul.addr %s350, 8
        %s352 = scalar_lea.vmem %s1, %s351
        %p353 = pneg %p89
        %p354 = pneg %p86
        %p355 = scmp.lt.s32.totalorder %s30, 1
        %s356 = scalar_select %p355, %s30, 1
        %p357 = scmp.lt.s32.totalorder %s31, 0
        %s358 = scalar_select %p357, %s31, 0
        %s359 = smul.addr %s356, 32
        %s360 = sadd.s32 %s358, %s359
        %s361 = smul.addr %s360, 8
        %s362 = scalar_lea.vmem %s2, %s361
        %p363 = pneg %p117
        %p364 = pneg %p114
        %p365 = pneg %p138
        %p366 = pneg %p135
        %p367 = pneg %p159
        %p368 = pneg %p156
        %p369 = pneg %p180
        %p370 = pneg %p177
        %p371 = pneg %p208
        %p372 = pneg %p205
        %s373 = sand.u32 %s195, 1
        %s374 = scalar_lea.sflag [#allocation3], %s373
        %s375 = sand.u32 %s195, 1
        %s376 = smul.addr %s375, 4
        %s377 = scalar_lea.vmem [#allocation2], %s376
        %p378 = pneg %p236
        %p379 = pneg %p233
        %s380 = sand.u32 %s26, 1
        %s381 = scalar_lea.sflag [#allocation5], %s380
        %s382 = sand.u32 %s223, 1
        %s383 = scalar_lea.vmem [#allocation4], %s382
        %p384 = pneg %p264
        %p385 = pneg %p261
        %s386 = sand.u32 %s26, 1
        %s387 = scalar_lea.sflag [#allocation5], %s386
        %s388 = sand.u32 %s251, 1
        %s389 = scalar_lea.vmem [#allocation6], %s388
        %s390 = smul.u32 2, %s31
        %p391 = scmp.lt.s32.totalorder %s30, 1
        %s392 = scalar_select %p391, %s30, 1
        %p393 = scmp.lt.s32.totalorder %s390, 1
        %s394 = scalar_select %p393, %s390, 1
        %s395 = smul.addr %s392, 16
        %s396 = sadd.s32 %s394, %s395
        %s397 = smul.addr %s396, 8
        %s398 = scalar_lea.vmem %s0, %s397
        %s399 = smul.u32 2, %s31
        %p400 = scmp.lt.s32.totalorder %s30, 1
        %s401 = scalar_select %p400, %s30, 1
        %p402 = scmp.lt.s32.totalorder %s31, 0
        %s403 = scalar_select %p402, %s31, 0
        %s404 = smul.addr %s401, 16
        %s405 = sadd.s32 %s403, %s404
        %s406 = smul.addr %s405, 8
        %s407 = scalar_lea.vmem %s1, %s406
        %p408 = scmp.lt.s32.totalorder %s30, 1
        %s409 = scalar_select %p408, %s30, 1
        %p410 = scmp.lt.s32.totalorder %s31, 0
        %s411 = scalar_select %p410, %s31, 0
        %s412 = smul.addr %s409, 32
        %s413 = sadd.s32 %s411, %s412
        %s414 = smul.addr %s413, 8
        %s415 = scalar_lea.vmem %s2, %s414
        %s416 = smul.u32 2, %s31
        %v417 = vld [vmem:[%s3] sm:$0x3]
        %v418 = vld [vmem:[%s398] sm:$0xff]
        %v419 = vld [vmem:[%s398 + $0x8] sm:$0xff]
        %v420 = vld [vmem:[%s398 + $0x10] sm:$0xff]
        %v421 = vld [vmem:[%s398 + $0x18] sm:$0xff]
        %v422 = vld [vmem:[%s398 + $0x20] sm:$0xff]
        %v423 = vld [vmem:[%s398 + $0x28] sm:$0xff]
        %v424 = vld [vmem:[%s398 + $0x30] sm:$0xff]
        %v425 = vld [vmem:[%s398 + $0x38] sm:$0xff]
        %v426 = vld [vmem:[%s398 + $0x40] sm:$0xff]
        %v427 = vld [vmem:[%s398 + $0x48] sm:$0xff]
        %v428 = vld [vmem:[%s398 + $0x50] sm:$0xff]
        %v429 = vld [vmem:[%s398 + $0x58] sm:$0xff]
        %v430 = vld [vmem:[%s398 + $0x60] sm:$0xff]
        %v431 = vld [vmem:[%s398 + $0x68] sm:$0xff]
        %v432 = vld [vmem:[%s398 + $0x70] sm:$0xff]
        %v433 = vld [vmem:[%s398 + $0x78] sm:$0xff]
        %vm434 = vcmask 523264
        %v436 = vsel %vm434, %v417, 0
        %438 = vmatprep.subr.mxu0 %v419
        %439 = vmatpush1.msra.mxu0 %v418
        %440 = vmatprep.subr.mxu0 %v421
        %441 = vmatpush1.msra.mxu0 %v420
        %442 = vmatprep.subr.mxu0 %v423
        %443 = vmatpush1.msra.mxu0 %v422
        %444 = vmatprep.subr.mxu0 %v425
        %445 = vmatpush1.msra.mxu0 %v424
        %446 = vmatprep.subr.mxu0 %v427
        %447 = vmatpush1.msra.mxu0 %v426
        %448 = vmatprep.subr.mxu0 %v429
        %449 = vmatpush1.msra.mxu0 %v428
        %450 = vmatprep.subr.mxu0 %v431
        %451 = vmatpush1.msra.mxu0 %v430
        %452 = vmatprep.subr.mxu0 %v433
        %453 = vmatpush1.msra.mxu0 %v432
        %454 = vmatprep.subr.mxu0 0.0
        %455 = vmatpush1.msra.mxu0 0.0
        %456 = vmatprep.subr.mxu0 0.0
        %457 = vmatpush1.msra.mxu0 0.0
        %458 = vmatprep.subr.mxu0 0.0
        %459 = vmatpush1.msra.mxu0 0.0
        %460 = vmatprep.subr.mxu0 0.0
        %461 = vmatpush1.msra.mxu0 0.0
        %462 = vmatprep.subr.mxu0 0.0
        %463 = vmatpush1.msra.mxu0 0.0
        %464 = vmatprep.subr.mxu0 0.0
        %465 = vmatpush1.msra.mxu0 0.0
        %466 = vmatprep.subr.mxu0 0.0
        %467 = vmatpush1.msra.mxu0 0.0
        %468 = vmatprep.subr.mxu0 0.0
        %469 = vmatpush1.msra.mxu0 0.0
        %470 = vmatprep.subr.mxu0 0.0
        %471 = vmatpush1.msra.mxu0 0.0
        %472 = vmatprep.subr.mxu0 0.0
        %473 = vmatpush1.msra.mxu0 0.0
        %474 = vmatprep.subr.mxu0 0.0
        %475 = vmatpush1.msra.mxu0 0.0
        %476 = vmatprep.subr.mxu0 0.0
        %477 = vmatpush1.msra.mxu0 0.0
        %478 = vmatprep.subr.mxu0 0.0
        %479 = vmatpush1.msra.mxu0 0.0
        %480 = vmatprep.subr.mxu0 0.0
        %481 = vmatpush1.msra.mxu0 0.0
        %482 = vmatprep.subr.mxu0 0.0
        %483 = vmatpush1.msra.mxu0 0.0
        %484 = vmatprep.subr.mxu0 0.0
        %485 = vmatpush1.msra.mxu0 0.0
        %486 = vmatprep.subr.mxu0 0.0
        %487 = vmatpush1.msra.mxu0 0.0
        %488 = vmatprep.subr.mxu0 0.0
        %489 = vmatpush1.msra.mxu0 0.0
        %490 = vmatprep.subr.mxu0 0.0
        %491 = vmatpush1.msra.mxu0 0.0
        %492 = vmatprep.subr.mxu0 0.0
        %493 = vmatpush1.msra.mxu0 0.0
        %494 = vmatprep.subr.mxu0 0.0
        %495 = vmatpush1.msra.mxu0 0.0
        %496 = vmatprep.subr.mxu0 0.0
        %497 = vmatpush1.msra.mxu0 0.0
        %498 = vmatprep.subr.mxu0 0.0
        %499 = vmatpush1.msra.mxu0 0.0
        %500 = vmatprep.subr.mxu0 0.0
        %501 = vmatpush1.msra.mxu0 0.0
        %502 = vmatprep.mubr.f32.mxu0 0.0
        %503 = vmatmul.mubr.f32.gmra.mrb[0].mxu0 %v436
        %v504 = vpop.f32.mrb[0].mxu0
        %v505 = vadd.f32 0.0, %v504
        %v506 = vpop.f32.mrb[0].mxu0
        %v507 = vadd.f32 0.0, %v506
        %508 = vdwg.mxu0
        %v509 = vsub.f32 0.0, %v505
        %v510 = vsub.f32 0.0, %v507
        %v511 = vmul.f32 %v509, 1.442695
        %v512 = vpow.pop %v511
        %v513 = vmul.f32 %v510, 1.442695
        %v514 = vpow.pop %v513
        %v515 = vadd.f32 %v512, 1.0
        %v516 = vadd.f32 %v514, 1.0
        %v517 = vrcp.pop %v515
        %v518 = vmul.f32 1.0, %v517
        %v519 = vrcp.pop %v516
        %v520 = vmul.f32 1.0, %v519
        %v523 = vcombine.low %v518, %v520
        %v525 = vunpack.c.l.s4 1983009808
        %v526 = vunpack.c.0.s8 %v525
        %v527 = vlaneseq
        %v528 = vshrl.u32 %v527, 7
        %v529 = vsub.s32 %v526, %v528
        %v530 = vrot.slane %v523, %v529
        %532 = vst [vmem:[%s377] sm:$0xf] %v530
        %v533 = vld [vmem:[%s4] sm:$0x3]
        %v534 = vld [vmem:[%s407] sm:$0xff]
        %v535 = vld [vmem:[%s407 + $0x8] sm:$0xff]
        %v536 = vld [vmem:[%s407 + $0x10] sm:$0xff]
        %v537 = vld [vmem:[%s407 + $0x18] sm:$0xff]
        %v538 = vld [vmem:[%s407 + $0x20] sm:$0xff]
        %v539 = vld [vmem:[%s407 + $0x28] sm:$0xff]
        %v540 = vld [vmem:[%s407 + $0x30] sm:$0xff]
        %v541 = vld [vmem:[%s407 + $0x38] sm:$0xff]
        %v542 = vld [vmem:[%s407 + $0x40] sm:$0xff]
        %v543 = vld [vmem:[%s407 + $0x48] sm:$0xff]
        %v544 = vld [vmem:[%s407 + $0x50] sm:$0xff]
        %v545 = vld [vmem:[%s407 + $0x58] sm:$0xff]
        %v546 = vld [vmem:[%s407 + $0x60] sm:$0xff]
        %v547 = vld [vmem:[%s407 + $0x68] sm:$0xff]
        %v548 = vld [vmem:[%s407 + $0x70] sm:$0xff]
        %v549 = vld [vmem:[%s407 + $0x78] sm:$0xff]
        %550 = vmatprep.subr.mxu0 0.0
        %551 = vmatpush1.msra.mxu0 %v534
        %552 = vmatprep.subr.mxu0 0.0
        %553 = vmatpush1.msra.mxu0 %v535
        %554 = vmatprep.subr.mxu0 0.0
        %555 = vmatpush1.msra.mxu0 %v536
        %556 = vmatprep.subr.mxu0 0.0
        %557 = vmatpush1.msra.mxu0 %v537
        %558 = vmatprep.subr.mxu0 0.0
        %559 = vmatpush1.msra.mxu0 %v538
        %560 = vmatprep.subr.mxu0 0.0
        %561 = vmatpush1.msra.mxu0 %v539
        %562 = vmatprep.subr.mxu0 0.0
        %563 = vmatpush1.msra.mxu0 %v540
        %564 = vmatprep.subr.mxu0 0.0
        %565 = vmatpush1.msra.mxu0 %v541
        %566 = vmatprep.subr.mxu0 0.0
        %567 = vmatpush1.msra.mxu0 %v542
        %568 = vmatprep.subr.mxu0 0.0
        %569 = vmatpush1.msra.mxu0 %v543
        %570 = vmatprep.subr.mxu0 0.0
        %571 = vmatpush1.msra.mxu0 %v544
        %572 = vmatprep.subr.mxu0 0.0
        %573 = vmatpush1.msra.mxu0 %v545
        %574 = vmatprep.subr.mxu0 0.0
        %575 = vmatpush1.msra.mxu0 %v546
        %576 = vmatprep.subr.mxu0 0.0
        %577 = vmatpush1.msra.mxu0 %v547
        %578 = vmatprep.subr.mxu0 0.0
        %579 = vmatpush1.msra.mxu0 %v548
        %580 = vmatprep.subr.mxu0 0.0
        %581 = vmatpush1.msra.mxu0 %v549
        %582 = vmatprep.subr.mxu0 0.0
        %583 = vmatpush1.msra.mxu0 0.0
        %584 = vmatprep.subr.mxu0 0.0
        %585 = vmatpush1.msra.mxu0 0.0
        %586 = vmatprep.subr.mxu0 0.0
        %587 = vmatpush1.msra.mxu0 0.0
        %588 = vmatprep.subr.mxu0 0.0
        %589 = vmatpush1.msra.mxu0 0.0
        %590 = vmatprep.subr.mxu0 0.0
        %591 = vmatpush1.msra.mxu0 0.0
        %592 = vmatprep.subr.mxu0 0.0
        %593 = vmatpush1.msra.mxu0 0.0
        %594 = vmatprep.subr.mxu0 0.0
        %595 = vmatpush1.msra.mxu0 0.0
        %596 = vmatprep.subr.mxu0 0.0
        %597 = vmatpush1.msra.mxu0 0.0
        %598 = vmatprep.subr.mxu0 0.0
        %599 = vmatpush1.msra.mxu0 0.0
        %600 = vmatprep.subr.mxu0 0.0
        %601 = vmatpush1.msra.mxu0 0.0
        %602 = vmatprep.subr.mxu0 0.0
        %603 = vmatpush1.msra.mxu0 0.0
        %604 = vmatprep.subr.mxu0 0.0
        %605 = vmatpush1.msra.mxu0 0.0
        %606 = vmatprep.subr.mxu0 0.0
        %607 = vmatpush1.msra.mxu0 0.0
        %608 = vmatprep.subr.mxu0 0.0
        %609 = vmatpush1.msra.mxu0 0.0
        %610 = vmatprep.subr.mxu0 0.0
        %611 = vmatpush1.msra.mxu0 0.0
        %612 = vmatprep.subr.mxu0 0.0
        %613 = vmatpush1.msra.mxu0 0.0
        %614 = vmatprep.mubr.f32.mxu0 0.0
        %615 = vmatmul.mubr.f32.gmra.mrb[0].mxu0 %v533
        %v616 = vpop.f32.mrb[0].mxu0
        %v617 = vadd.f32 0.0, %v616
        %v618 = vpop.f32.mrb[0].mxu0
        %619 = vdwg.mxu0
        %v620 = vpack.c.bf16 %v617, %v617
        %vm621 = vcmask 516096
        %622 = vst.msk [vmem:[%s383] sm:$0x1] %vm621, %v620
        %v623 = vld [vmem:[%s5] sm:$0xf]
        %v624 = vld [vmem:[%s415] sm:$0xff]
        %v625 = vld [vmem:[%s415 + $0x8] sm:$0xff]
        %v626 = vld [vmem:[%s415 + $0x10] sm:$0xff]
        %v627 = vld [vmem:[%s415 + $0x18] sm:$0xff]
        %v628 = vld [vmem:[%s415 + $0x20] sm:$0xff]
        %v629 = vld [vmem:[%s415 + $0x28] sm:$0xff]
        %v630 = vld [vmem:[%s415 + $0x30] sm:$0xff]
        %v631 = vld [vmem:[%s415 + $0x38] sm:$0xff]
        %v632 = vld [vmem:[%s415 + $0x40] sm:$0xff]
        %v633 = vld [vmem:[%s415 + $0x48] sm:$0xff]
        %v634 = vld [vmem:[%s415 + $0x50] sm:$0xff]
        %v635 = vld [vmem:[%s415 + $0x58] sm:$0xff]
        %v636 = vld [vmem:[%s415 + $0x60] sm:$0xff]
        %v637 = vld [vmem:[%s415 + $0x68] sm:$0xff]
        %v638 = vld [vmem:[%s415 + $0x70] sm:$0xff]
        %v639 = vld [vmem:[%s415 + $0x78] sm:$0xff]
        %v640 = vld [vmem:[%s415 + $0x80] sm:$0xff]
        %v641 = vld [vmem:[%s415 + $0x88] sm:$0xff]
        %v642 = vld [vmem:[%s415 + $0x90] sm:$0xff]
        %v643 = vld [vmem:[%s415 + $0x98] sm:$0xff]
        %v644 = vld [vmem:[%s415 + $0xa0] sm:$0xff]
        %v645 = vld [vmem:[%s415 + $0xa8] sm:$0xff]
        %v646 = vld [vmem:[%s415 + $0xb0] sm:$0xff]
        %v647 = vld [vmem:[%s415 + $0xb8] sm:$0xff]
        %v648 = vld [vmem:[%s415 + $0xc0] sm:$0xff]
        %v649 = vld [vmem:[%s415 + $0xc8] sm:$0xff]
        %v650 = vld [vmem:[%s415 + $0xd0] sm:$0xff]
        %v651 = vld [vmem:[%s415 + $0xd8] sm:$0xff]
        %v652 = vld [vmem:[%s415 + $0xe0] sm:$0xff]
        %v653 = vld [vmem:[%s415 + $0xe8] sm:$0xff]
        %v654 = vld [vmem:[%s415 + $0xf0] sm:$0xff]
        %v655 = vld [vmem:[%s415 + $0xf8] sm:$0xff]
        %v658 = vunpack.c.l.s4 1983009808
        %v659 = vunpack.c.0.s8 %v658
        %v660 = vlaneseq
        %v661 = vshrl.u32 %v660, 7
        %v662 = vsub.s32 %v659, %v661
        %v663 = vrot.slane %v623, %v662
        %v664 = vcombine.high %v663, %v663
        %667 = vmatprep.subr.mxu0 0.0
        %668 = vmatpush1.msra.mxu0 %v624
        %669 = vmatprep.subr.mxu0 0.0
        %670 = vmatpush1.msra.mxu0 %v625
        %671 = vmatprep.subr.mxu0 0.0
        %672 = vmatpush1.msra.mxu0 %v626
        %673 = vmatprep.subr.mxu0 0.0
        %674 = vmatpush1.msra.mxu0 %v627
        %675 = vmatprep.subr.mxu0 0.0
        %676 = vmatpush1.msra.mxu0 %v628
        %677 = vmatprep.subr.mxu0 0.0
        %678 = vmatpush1.msra.mxu0 %v629
        %679 = vmatprep.subr.mxu0 0.0
        %680 = vmatpush1.msra.mxu0 %v630
        %681 = vmatprep.subr.mxu0 0.0
        %682 = vmatpush1.msra.mxu0 %v631
        %683 = vmatprep.subr.mxu0 0.0
        %684 = vmatpush1.msra.mxu0 %v632
        %685 = vmatprep.subr.mxu0 0.0
        %686 = vmatpush1.msra.mxu0 %v633
        %687 = vmatprep.subr.mxu0 0.0
        %688 = vmatpush1.msra.mxu0 %v634
        %689 = vmatprep.subr.mxu0 0.0
        %690 = vmatpush1.msra.mxu0 %v635
        %691 = vmatprep.subr.mxu0 0.0
        %692 = vmatpush1.msra.mxu0 %v636
        %693 = vmatprep.subr.mxu0 0.0
        %694 = vmatpush1.msra.mxu0 %v637
        %695 = vmatprep.subr.mxu0 0.0
        %696 = vmatpush1.msra.mxu0 %v638
        %697 = vmatprep.subr.mxu0 0.0
        %698 = vmatpush1.msra.mxu0 %v639
        %699 = vmatprep.subr.mxu0 0.0
        %700 = vmatpush1.msra.mxu0 %v640
        %701 = vmatprep.subr.mxu0 0.0
        %702 = vmatpush1.msra.mxu0 %v641
        %703 = vmatprep.subr.mxu0 0.0
        %704 = vmatpush1.msra.mxu0 %v642
        %705 = vmatprep.subr.mxu0 0.0
        %706 = vmatpush1.msra.mxu0 %v643
        %707 = vmatprep.subr.mxu0 0.0
        %708 = vmatpush1.msra.mxu0 %v644
        %709 = vmatprep.subr.mxu0 0.0
        %710 = vmatpush1.msra.mxu0 %v645
        %711 = vmatprep.subr.mxu0 0.0
        %712 = vmatpush1.msra.mxu0 %v646
        %713 = vmatprep.subr.mxu0 0.0
        %714 = vmatpush1.msra.mxu0 %v647
        %715 = vmatprep.subr.mxu0 0.0
        %716 = vmatpush1.msra.mxu0 %v648
        %717 = vmatprep.subr.mxu0 0.0
        %718 = vmatpush1.msra.mxu0 %v649
        %719 = vmatprep.subr.mxu0 0.0
        %720 = vmatpush1.msra.mxu0 %v650
        %721 = vmatprep.subr.mxu0 0.0
        %722 = vmatpush1.msra.mxu0 %v651
        %723 = vmatprep.subr.mxu0 0.0
        %724 = vmatpush1.msra.mxu0 %v652
        %725 = vmatprep.subr.mxu0 0.0
        %726 = vmatpush1.msra.mxu0 %v653
        %727 = vmatprep.subr.mxu0 0.0
        %728 = vmatpush1.msra.mxu0 %v654
        %729 = vmatprep.subr.mxu0 0.0
        %730 = vmatpush1.msra.mxu0 %v655
        %731 = vmatprep.mubr.f32.mxu0 %v664
        %732 = vmatmul.mubr.f32.gmra.mrb[0].mxu0 %v663
        %v733 = vpop.f32.mrb[0].mxu0
        %v734 = vadd.f32 0.0, %v733
        %v735 = vpop.f32.mrb[0].mxu0
        %736 = vdwg.mxu0
        %v737 = vpack.c.bf16 %v734, %v734
        %vm738 = vcmask 122880
        %739 = vst.msk [vmem:[%s389] sm:$0x1] %vm738, %v737
        %s740 = sand.u32 %s195, 1
        %s741 = scalar_lea.sflag [#allocation3], %s740
        %s742 = sand.u32 %s195, 1
        %s743 = smul.addr %s742, 4
        %s744 = scalar_lea.vmem [#allocation2], %s743
        %s745 = sand.u32 %s26, 1
        %s746 = scalar_lea.sflag [#allocation5], %s745
        %s747 = sand.u32 %s223, 1
        %s748 = scalar_lea.vmem [#allocation4], %s747
        %s749 = sand.u32 %s26, 1
        %s750 = scalar_lea.sflag [#allocation5], %s749
        %s751 = sand.u32 %s251, 1
        %s752 = scalar_lea.vmem [#allocation6], %s751
        // Predicated region
        $region45: #{tpu_custom_call.1} parent=43 // pred_check
          %p753 = pneg %p205
        $region46: #{tpu_custom_call.1} parent=43 // pred_check_branch
          %755 = sbr.rel (%p753) target = $region48
        $region47: #{tpu_custom_call.1} parent=43 // pred_region
          %s756 = smul.u32 2, %s31
          %s758 = ssub.s32 64, 64
          %759 = vsyncadd %s741, %s758
          %s760 = smul.addr %s30, 2
          %s761 = sadd.s32 %s756, %s760
          %s762 = smul.addr %s761, 32
          %s763 = scalar_lea.hbm %s6, %s762
          %s765 = sshll.u32 %s744, 4
          %s766 = int_to_ptr.vmem [resolvable:$true] %s765
          %768 = dma.vmem_to_hbm [thread:$0]  %s766, 64, %s763, %s741
        $region48: #{tpu_custom_call.1} parent=43 // pred_fallthru
          _
        // Predicated region
        $region49: #{tpu_custom_call.1} parent=43 // pred_check
          %p769 = pneg %p233
        $region50: #{tpu_custom_call.1} parent=43 // pred_check_branch
          %771 = sbr.rel (%p769) target = $region52
        $region51: #{tpu_custom_call.1} parent=43 // pred_region
          %s773 = ssub.s32 16, 16
          %774 = vsyncadd %s746, %s773
          %s775 = sadd.s32 %s31, %s30
          %s776 = smul.addr %s775, 16
          %s777 = scalar_lea.hbm %s7, %s776
          %s779 = sshll.u32 %s748, 4
          %s780 = int_to_ptr.vmem [resolvable:$true] %s779
          %782 = dma.vmem_to_hbm [thread:$0]  %s780, 16, %s777, %s746
        $region52: #{tpu_custom_call.1} parent=43 // pred_fallthru
          _
        // Predicated region
        $region53: #{tpu_custom_call.1} parent=43 // pred_check
          %p783 = pneg %p261
        $region54: #{tpu_custom_call.1} parent=43 // pred_check_branch
          %785 = sbr.rel (%p783) target = $region56
        $region55: #{tpu_custom_call.1} parent=43 // pred_region
          %s787 = ssub.s32 16, 16
          %788 = vsyncadd %s750, %s787
          %s789 = sadd.s32 %s31, %s30
          %s790 = smul.addr %s789, 16
          %s791 = scalar_lea.hbm %s8, %s790
          %s793 = sshll.u32 %s752, 4
          %s794 = int_to_ptr.vmem [resolvable:$true] %s793
          %796 = dma.vmem_to_hbm [thread:$0]  %s794, 16, %s791, %s750
        $region56: #{tpu_custom_call.1} parent=43 // pred_fallthru
          _
      $region44: #{tpu_custom_call.1} parent=5 // pred_fallthru
        _
      %p797 = scmp.le.s32.totalorder 2, %s21
      // Predicated region
      $region57: #{tpu_custom_call.1} parent=5 // pred_check
        %p798 = pneg %p797
      $region58: #{tpu_custom_call.1} parent=5 // pred_check_branch
        %800 = sbr.rel (%p798) target = $region60
      $region59: #{tpu_custom_call.1} parent=5 // pred_region
        %s801 = ssub.s32 %s21, 2
        // Predicated region
        $region61: #{tpu_custom_call.1} parent=59 // pred_check
          %p802 = pneg %p211
        $region62: #{tpu_custom_call.1} parent=59 // pred_check_branch
          %804 = sbr.rel (%p802) target = $region64
        $region63: #{tpu_custom_call.1} parent=59 // pred_region
          %s805 = sand.u32 %s196, 1
          %s806 = scalar_lea.sflag [#allocation3], %s805
          %s807 = sand.u32 %s196, 1
          %s808 = smul.addr %s807, 4
          %s809 = scalar_lea.vmem [#allocation2], %s808
          %810 = dma.done %s806, 64
        $region64: #{tpu_custom_call.1} parent=59 // pred_fallthru
          _
        // Predicated region
        $region65: #{tpu_custom_call.1} parent=59 // pred_check
          %p811 = pneg %p239
        $region66: #{tpu_custom_call.1} parent=59 // pred_check_branch
          %813 = sbr.rel (%p811) target = $region68
        $region67: #{tpu_custom_call.1} parent=59 // pred_region
          %s814 = sand.u32 %s27, 1
          %s815 = scalar_lea.sflag [#allocation5], %s814
          %s816 = sand.u32 %s224, 1
          %s817 = scalar_lea.vmem [#allocation4], %s816
          %818 = dma.done %s815, 16
        $region68: #{tpu_custom_call.1} parent=59 // pred_fallthru
          _
        // Predicated region
        $region69: #{tpu_custom_call.1} parent=59 // pred_check
          %p819 = pneg %p267
        $region70: #{tpu_custom_call.1} parent=59 // pred_check_branch
          %821 = sbr.rel (%p819) target = $region72
        $region71: #{tpu_custom_call.1} parent=59 // pred_region
          %s822 = sand.u32 %s27, 1
          %s823 = scalar_lea.sflag [#allocation5], %s822
          %s824 = sand.u32 %s252, 1
          %s825 = scalar_lea.vmem [#allocation6], %s824
          %826 = dma.done %s823, 16
        $region72: #{tpu_custom_call.1} parent=59 // pred_fallthru
          _
      $region60: #{tpu_custom_call.1} parent=5 // pred_fallthru
        _
    $region6: #{tpu_custom_call.1} parent=1 // loop_footer
      %s25 = sadd.s32 1, %s21
    $region7: #{tpu_custom_call.1} parent=1 // loop_footer_branch
      %20 = sbr.rel target = $region3
    $region8: #{tpu_custom_call.1} parent=1 // loop_exit
      _
    %827 = vsyncpa [#allocation3], 1
    %s828 = scalar_lea.sflag [#allocation3], 1
    %829 = vsyncpa %s828, 1
    %830 = vsyncpa [#allocation5], 1
    %s831 = scalar_lea.sflag [#allocation5], 1
    %832 = vsyncpa %s831, 1

</llo_original>
